<compile_context>
chip_gen: v5e
topology: v5e:2x2
jax: 0.10.0
libtpu: 0.0.40
codegen_flags: <defaults>
</compile_context>

<pallas_src>
import functools

import jax
import jax.numpy as jnp
from jax.experimental import pallas as pl
from jax.experimental.pallas import tpu as pltpu


def _round_up(x, m):
    return ((x + m - 1) // m) * m


def marking_head_kernel(emb_ref, sent_ref,
                        w1_ref, b1_ref,
                        ws_ref, bs_ref,
                        w2_ref, b2_ref,
                        wp_ref, bp_ref,
                        out_ref):
    # emb/sent blocks: (T, pack*D) bf16, 4 logical rows packed along lanes.
    # fc1(embedding) / sentence_fc(sentence): dense 128-lane MXU pushes,
    # f32 accumulation; relu + sum on the VPU (single lane-dense add).
    h_e = jnp.dot(emb_ref[...], w1_ref[...], preferred_element_type=jnp.float32)
    h_s = jnp.dot(sent_ref[...], ws_ref[...], preferred_element_type=jnp.float32)
    x = jnp.maximum(h_e + b1_ref[...], 0.0) + jnp.maximum(h_s + bs_ref[...], 0.0)

    # fc2 + relu (back to bf16 for the MXU, accumulate f32).
    x = jnp.dot(x.astype(w2_ref.dtype), w2_ref[...],
                preferred_element_type=jnp.float32) + b2_ref[...]
    x = jnp.maximum(x, 0.0)

    # Prediction reduced to the logit difference d = l1 - l0.  wp_ref's columns
    # (2j, 2j+1) both carry wp_d for packed row j, so dd[:, 2j] == dd[:, 2j+1]
    # == d_j.  Closed-form 2-class log-softmax (exp/log on the EUP slot):
    #   logp0 = -softplus(d), logp1 = d - softplus(d)
    dd = jnp.dot(x.astype(wp_ref.dtype), wp_ref[...],
                 preferred_element_type=jnp.float32) + bp_ref[...]
    sp = jnp.maximum(dd, 0.0) + jnp.log(1.0 + jnp.exp(-jnp.abs(dd)))
    lane = jax.lax.broadcasted_iota(jnp.int32, dd.shape, 1)
    out_ref[...] = jnp.where((lane & 1) == 0, -sp, dd - sp).astype(out_ref.dtype)


@functools.partial(jax.jit, static_argnames=("tile_rows",))
def marking_head_forward(embedding, sentence, params, tile_rows=8192):
    """embedding, sentence: (N, dimension) f32. Returns (N, 2) log-probs (f32)."""
    n, d = embedding.shape
    pack = params["bp"].shape[-1] // 2          # logical rows per packed row
    compute_dtype = params["w1"].dtype

    # Pad N to a multiple of `pack` so row packing is a free row-major view.
    n_pad = _round_up(max(n, pack), pack)
    if n_pad != n:
        pad = ((0, n_pad - n), (0, 0))
        embedding = jnp.pad(embedding, pad)
        sentence = jnp.pad(sentence, pad)
    g = n_pad // pack                           # packed rows

    emb = embedding.astype(compute_dtype).reshape(g, pack * d)
    sent = sentence.astype(compute_dtype).reshape(g, pack * d)

    # Packed-row tile: multiple of 16 sublanes (bf16 blocks); cap so the grid
    # has >=4 steps when possible (lets v7x's two TensorCores share the loop).
    tile_p = max(16, _round_up(tile_rows // pack, 16))
    tile_p = min(tile_p, max(16, _round_up(pl.cdiv(g, 4), 16)))
    grid = (pl.cdiv(g, tile_p),)

    row_spec = pl.BlockSpec((tile_p, pack * d), lambda i: (i, 0))

    def resident(arr):
        # Same block index every step -> stays VMEM-resident across the grid.
        return pl.BlockSpec(arr.shape, lambda i: (0, 0))

    out_packed = pl.pallas_call(
        marking_head_kernel,
        out_shape=jax.ShapeDtypeStruct((g, 2 * pack), jnp.float32),
        grid=grid,
        in_specs=[
            row_spec, row_spec,
            resident(params["w1"]), resident(params["b1"]),
            resident(params["ws"]), resident(params["bs"]),
            resident(params["w2"]), resident(params["b2"]),
            resident(params["wp"]), resident(params["bp"]),
        ],
        out_specs=pl.BlockSpec((tile_p, 2 * pack), lambda i: (i, 0)),
        compiler_params=pltpu.CompilerParams(
            dimension_semantics=("parallel",)),
    )(emb, sent,
      params["w1"], params["b1"], params["ws"], params["bs"],
      params["w2"], params["b2"], params["wp"], params["bp"])

    # Columns (2j, 2j+1) of packed row gi are (logp0, logp1) of logical row
    # gi*pack + j, so this reshape is a free row-major view.
    return out_packed.reshape(n_pad, 2)[:n]


def init_raw_params(key, dimension, hidden, out_dim=2):
    """Deterministic synthetic init (uniform, like torch Linear's scale)."""
    ks = jax.random.split(key, 8)

    def lin(kw, kb, fan_in, fan_out):
        bound = 1.0 / jnp.sqrt(float(fan_in))
        w = jax.random.uniform(kw, (fan_in, fan_out), jnp.float32, -bound, bound)
        b = jax.random.uniform(kb, (1, fan_out), jnp.float32, -bound, bound)
        return w, b

    w1, b1 = lin(ks[0], ks[1], dimension, hidden)
    ws, bs = lin(ks[2], ks[3], dimension, hidden)
    w2, b2 = lin(ks[4], ks[5], hidden, hidden)
    wp, bp = lin(ks[6], ks[7], hidden, out_dim)
    return dict(w1=w1, b1=b1, ws=ws, bs=bs, w2=w2, b2=b2, wp=wp, bp=bp)


def prepare_params(raw, pack=4, compute_dtype=jnp.bfloat16):
    """Build pack-x block-diagonal (lane-packed) weights; cast weights to bf16.

    pack=4 fills the 128 lanes exactly at dimension=hidden=32; pack=8 (256-wide
    weights) is the v7x-oriented variant for the 256x256 MXU.
    """
    d, h = raw["w1"].shape

    def block_diag(w, reps):
        fi, fo = w.shape
        out = jnp.zeros((reps * fi, reps * fo), w.dtype)
        for j in range(reps):
            out = out.at[j * fi:(j + 1) * fi, j * fo:(j + 1) * fo].set(w)
        return out

    w1p = block_diag(raw["w1"], pack)
    wsp = block_diag(raw["ws"], pack)
    w2p = block_diag(raw["w2"], pack)

    # Prediction collapsed to the logit difference; columns duplicated so the
    # kernel's lane-parity select produces [logp0, logp1] interleaved.
    wp_d = (raw["wp"][:, 1] - raw["wp"][:, 0])[:, None]          # (h, 1)
    bp_d = raw["bp"][0, 1] - raw["bp"][0, 0]                     # scalar
    wpp = jnp.repeat(block_diag(wp_d, pack), 2, axis=1)          # (pack*h, 2*pack)
    bpp = jnp.full((1, 2 * pack), bp_d, jnp.float32)

    tile_bias = lambda b: jnp.tile(b, (1, pack)).astype(jnp.float32)
    return dict(
        w1=w1p.astype(compute_dtype), b1=tile_bias(raw["b1"]),
        ws=wsp.astype(compute_dtype), bs=tile_bias(raw["bs"]),
        w2=w2p.astype(compute_dtype), b2=tile_bias(raw["b2"]),
        wp=wpp.astype(compute_dtype), bp=bpp,
    )


def reference_bf16(embedding, sentence, raw, compute_dtype=jnp.bfloat16):
    """Pure-JAX mirror of exactly what the kernel computes (bf16 MXU inputs)."""
    cast = lambda a: a.astype(compute_dtype)
    h_e = jnp.maximum(jnp.dot(cast(embedding), cast(raw["w1"]),
                              preferred_element_type=jnp.float32) + raw["b1"], 0.0)
    h_s = jnp.maximum(jnp.dot(cast(sentence), cast(raw["ws"]),
                              preferred_element_type=jnp.float32) + raw["bs"], 0.0)
    x = h_e + h_s
    x = jnp.maximum(jnp.dot(cast(x), cast(raw["w2"]),
                            preferred_element_type=jnp.float32) + raw["b2"], 0.0)
    wp_d = cast((raw["wp"][:, 1] - raw["wp"][:, 0])[:, None])
    bp_d = raw["bp"][0, 1] - raw["bp"][0, 0]
    d = jnp.dot(cast(x), wp_d, preferred_element_type=jnp.float32) + bp_d
    sp = jnp.maximum(d, 0.0) + jnp.log(1.0 + jnp.exp(-jnp.abs(d)))
    return jnp.concatenate([-sp, d - sp], axis=-1)


def reference_f32(embedding, sentence, raw):
    """Full-precision reference matching the original PyTorch module."""
    relu = lambda t: jnp.maximum(t, 0.0)
    x = relu(embedding @ raw["w1"] + raw["b1"]) + relu(sentence @ raw["ws"] + raw["bs"])
    x = relu(x @ raw["w2"] + raw["b2"])
    return jax.nn.log_softmax(x @ raw["wp"] + raw["bp"], axis=-1)


if __name__ == "__main__":
    # Small shapes consistent with the module: dimension = hidden = 32.
    N, dimension, hidden = 160, 32, 32
    key = jax.random.PRNGKey(0)
    k_emb, k_sent, k_par = jax.random.split(key, 3)

    embedding = jax.random.normal(k_emb, (N, dimension), jnp.float32)
    sentence = jax.random.normal(k_sent, (N, dimension), jnp.float32)

    raw = init_raw_params(k_par, dimension, hidden)
    params = prepare_params(raw, pack=4)

    # tile_rows=64 -> 16 packed rows per step -> grid of 3 with a partial last
    # block, exercising the pipelined / clipped-writeback path at small N.
    out = marking_head_forward(embedding, sentence, params, tile_rows=64)
    out = jax.block_until_ready(out)

    ref16 = reference_bf16(embedding, sentence, raw)   # mirrors kernel math
    ref32 = reference_f32(embedding, sentence, raw)    # original f32 module

    assert out.shape == (N, 2)
    assert bool(jnp.all(jnp.isfinite(out))), "non-finite output"
    assert jnp.allclose(out, ref16, atol=1e-4, rtol=1e-4), "mismatch vs bf16 reference"
    assert jnp.allclose(out, ref32, atol=1e-1, rtol=1e-1), "mismatch vs f32 reference"
    print("KERNEL_OK")
</pallas_src>

<mosaic_0001>
module attributes {stable_mosaic.version = 11 : i64} {
  func.func @marking_head_kernel(%arg0: i32, %arg1: memref<16x128xbf16, #tpu.memory_space<vmem>>, %arg2: memref<16x128xbf16, #tpu.memory_space<vmem>>, %arg3: memref<128x128xbf16, #tpu.memory_space<vmem>>, %arg4: memref<1x128xf32, #tpu.memory_space<vmem>>, %arg5: memref<128x128xbf16, #tpu.memory_space<vmem>>, %arg6: memref<1x128xf32, #tpu.memory_space<vmem>>, %arg7: memref<128x128xbf16, #tpu.memory_space<vmem>>, %arg8: memref<1x128xf32, #tpu.memory_space<vmem>>, %arg9: memref<128x8xbf16, #tpu.memory_space<vmem>>, %arg10: memref<1x8xf32, #tpu.memory_space<vmem>>, %arg11: memref<16x8xf32, #tpu.memory_space<vmem>>) attributes {dimension_semantics = [#tpu.dimension_semantics<parallel>], iteration_bounds = array<i64: 3>, scalar_prefetch = 0 : i64, scratch_operands = 0 : i64, tpu.core_type = #tpu.core_type<tc>, window_params = [{transform_indices = @transform_0, window_bounds = array<i64: 16, 128>}, {transform_indices = @transform_1, window_bounds = array<i64: 16, 128>}, {pipeline_mode = #tpu.pipeline_mode<synchronous>, transform_indices = @transform_2, window_bounds = array<i64: 128, 128>}, {pipeline_mode = #tpu.pipeline_mode<synchronous>, transform_indices = @transform_3, window_bounds = array<i64: 1, 128>}, {pipeline_mode = #tpu.pipeline_mode<synchronous>, transform_indices = @transform_4, window_bounds = array<i64: 128, 128>}, {pipeline_mode = #tpu.pipeline_mode<synchronous>, transform_indices = @transform_5, window_bounds = array<i64: 1, 128>}, {pipeline_mode = #tpu.pipeline_mode<synchronous>, transform_indices = @transform_6, window_bounds = array<i64: 128, 128>}, {pipeline_mode = #tpu.pipeline_mode<synchronous>, transform_indices = @transform_7, window_bounds = array<i64: 1, 128>}, {pipeline_mode = #tpu.pipeline_mode<synchronous>, transform_indices = @transform_8, window_bounds = array<i64: 128, 8>}, {pipeline_mode = #tpu.pipeline_mode<synchronous>, transform_indices = @transform_9, window_bounds = array<i64: 1, 8>}, {transform_indices = @transform_10, window_bounds = array<i64: 16, 8>}]} {
    %c0 = arith.constant 0 : index
    %c0_0 = arith.constant 0 : index
    %0 = vector.load %arg1[%c0, %c0_0] : memref<16x128xbf16, #tpu.memory_space<vmem>>, vector<16x128xbf16>
    %c0_1 = arith.constant 0 : index
    %c0_2 = arith.constant 0 : index
    %1 = vector.load %arg3[%c0_1, %c0_2] : memref<128x128xbf16, #tpu.memory_space<vmem>>, vector<128x128xbf16>
    %cst = arith.constant dense<0.000000e+00> : vector<16x128xf32>
    %2 = tpu.matmul %0, %1, %cst {dimension_numbers = #tpu.dot_dimension_numbers<[1], [0], [0], [1], [0, 0, 1, 1], [], []>} : vector<16x128xbf16>, vector<128x128xbf16>, vector<16x128xf32> -> vector<16x128xf32>
    %c0_3 = arith.constant 0 : index
    %c0_4 = arith.constant 0 : index
    %3 = vector.load %arg2[%c0_3, %c0_4] : memref<16x128xbf16, #tpu.memory_space<vmem>>, vector<16x128xbf16>
    %c0_5 = arith.constant 0 : index
    %c0_6 = arith.constant 0 : index
    %4 = vector.load %arg5[%c0_5, %c0_6] : memref<128x128xbf16, #tpu.memory_space<vmem>>, vector<128x128xbf16>
    %cst_7 = arith.constant dense<0.000000e+00> : vector<16x128xf32>
    %5 = tpu.matmul %3, %4, %cst_7 {dimension_numbers = #tpu.dot_dimension_numbers<[1], [0], [0], [1], [0, 0, 1, 1], [], []>} : vector<16x128xbf16>, vector<128x128xbf16>, vector<16x128xf32> -> vector<16x128xf32>
    %c0_8 = arith.constant 0 : index
    %c0_9 = arith.constant 0 : index
    %6 = vector.load %arg4[%c0_8, %c0_9] : memref<1x128xf32, #tpu.memory_space<vmem>>, vector<1x128xf32>
    %7 = vector.broadcast %6 : vector<1x128xf32> to vector<16x128xf32>
    %8 = arith.addf %2, %7 : vector<16x128xf32>
    %cst_10 = arith.constant 0.000000e+00 : f32
    %9 = vector.broadcast %cst_10 : f32 to vector<16x128xf32>
    %10 = arith.maximumf %8, %9 : vector<16x128xf32>
    %c0_11 = arith.constant 0 : index
    %c0_12 = arith.constant 0 : index
    %11 = vector.load %arg6[%c0_11, %c0_12] : memref<1x128xf32, #tpu.memory_space<vmem>>, vector<1x128xf32>
    %12 = vector.broadcast %11 : vector<1x128xf32> to vector<16x128xf32>
    %13 = arith.addf %5, %12 : vector<16x128xf32>
    %cst_13 = arith.constant 0.000000e+00 : f32
    %14 = vector.broadcast %cst_13 : f32 to vector<16x128xf32>
    %15 = arith.maximumf %13, %14 : vector<16x128xf32>
    %16 = arith.addf %10, %15 : vector<16x128xf32>
    %17 = arith.truncf %16 : vector<16x128xf32> to vector<16x128xbf16>
    %c0_14 = arith.constant 0 : index
    %c0_15 = arith.constant 0 : index
    %18 = vector.load %arg7[%c0_14, %c0_15] : memref<128x128xbf16, #tpu.memory_space<vmem>>, vector<128x128xbf16>
    %cst_16 = arith.constant dense<0.000000e+00> : vector<16x128xf32>
    %19 = tpu.matmul %17, %18, %cst_16 {dimension_numbers = #tpu.dot_dimension_numbers<[1], [0], [0], [1], [0, 0, 1, 1], [], []>} : vector<16x128xbf16>, vector<128x128xbf16>, vector<16x128xf32> -> vector<16x128xf32>
    %c0_17 = arith.constant 0 : index
    %c0_18 = arith.constant 0 : index
    %20 = vector.load %arg8[%c0_17, %c0_18] : memref<1x128xf32, #tpu.memory_space<vmem>>, vector<1x128xf32>
    %21 = vector.broadcast %20 : vector<1x128xf32> to vector<16x128xf32>
    %22 = arith.addf %19, %21 : vector<16x128xf32>
    %cst_19 = arith.constant 0.000000e+00 : f32
    %23 = vector.broadcast %cst_19 : f32 to vector<16x128xf32>
    %24 = arith.maximumf %22, %23 : vector<16x128xf32>
    %25 = arith.truncf %24 : vector<16x128xf32> to vector<16x128xbf16>
    %c0_20 = arith.constant 0 : index
    %c0_21 = arith.constant 0 : index
    %26 = vector.load %arg9[%c0_20, %c0_21] : memref<128x8xbf16, #tpu.memory_space<vmem>>, vector<128x8xbf16>
    %cst_22 = arith.constant dense<0.000000e+00> : vector<16x8xf32>
    %27 = tpu.matmul %25, %26, %cst_22 {dimension_numbers = #tpu.dot_dimension_numbers<[1], [0], [0], [1], [0, 0, 1, 1], [], []>} : vector<16x128xbf16>, vector<128x8xbf16>, vector<16x8xf32> -> vector<16x8xf32>
    %c0_23 = arith.constant 0 : index
    %c0_24 = arith.constant 0 : index
    %28 = vector.load %arg10[%c0_23, %c0_24] : memref<1x8xf32, #tpu.memory_space<vmem>>, vector<1x8xf32>
    %29 = vector.broadcast %28 : vector<1x8xf32> to vector<16x8xf32>
    %30 = arith.addf %27, %29 : vector<16x8xf32>
    %cst_25 = arith.constant 0.000000e+00 : f32
    %31 = vector.broadcast %cst_25 : f32 to vector<16x8xf32>
    %32 = arith.maximumf %30, %31 : vector<16x8xf32>
    %33 = math.absf %30 : vector<16x8xf32>
    %cst_26 = arith.constant 0.000000e+00 : f32
    %34 = vector.broadcast %cst_26 : f32 to vector<16x8xf32>
    %35 = arith.subf %34, %33 : vector<16x8xf32>
    %36 = math.exp %35 : vector<16x8xf32>
    %cst_27 = arith.constant 1.000000e+00 : f32
    %37 = vector.broadcast %cst_27 : f32 to vector<16x8xf32>
    %38 = arith.addf %37, %36 : vector<16x8xf32>
    %39 = math.log %38 : vector<16x8xf32>
    %40 = arith.addf %32, %39 : vector<16x8xf32>
    %41 = tpu.iota {dimensions = array<i32: 1>} : vector<16x8xi32>
    %c1_i32 = arith.constant 1 : i32
    %42 = vector.broadcast %c1_i32 : i32 to vector<16x8xi32>
    %43 = arith.andi %41, %42 : vector<16x8xi32>
    %c0_i32 = arith.constant 0 : i32
    %44 = vector.broadcast %c0_i32 : i32 to vector<16x8xi32>
    %45 = arith.cmpi eq, %43, %44 : vector<16x8xi32>
    %cst_28 = arith.constant 0.000000e+00 : f32
    %46 = vector.broadcast %cst_28 : f32 to vector<16x8xf32>
    %47 = arith.subf %46, %40 : vector<16x8xf32>
    %48 = arith.subf %30, %40 : vector<16x8xf32>
    %49 = arith.select %45, %47, %48 : vector<16x8xi1>, vector<16x8xf32>
    %c0_29 = arith.constant 0 : index
    %c0_30 = arith.constant 0 : index
    %50 = vector.load %arg11[%c0_29, %c0_30] : memref<16x8xf32, #tpu.memory_space<vmem>>, vector<16x8xf32>
    tpu.vector_store %arg11[%c0_29, %c0_30], %49 {strides = array<i32>} : memref<16x8xf32, #tpu.memory_space<vmem>>, vector<16x8xf32>,
    return
  }
  func.func @transform_0(%arg0: i32) -> (i32, i32) {
    %c0_i32 = arith.constant 0 : i32
    %c0_i32_0 = arith.constant 0 : i32
    return %arg0, %c0_i32 : i32, i32
  }
  func.func @transform_1(%arg0: i32) -> (i32, i32) {
    %c0_i32 = arith.constant 0 : i32
    %c0_i32_0 = arith.constant 0 : i32
    return %arg0, %c0_i32 : i32, i32
  }
  func.func @transform_2(%arg0: i32) -> (i32, i32) {
    %c0_i32 = arith.constant 0 : i32
    %c0_i32_0 = arith.constant 0 : i32
    %c0_i32_1 = arith.constant 0 : i32
    return %c0_i32, %c0_i32_0 : i32, i32
  }
  func.func @transform_3(%arg0: i32) -> (i32, i32) {
    %c0_i32 = arith.constant 0 : i32
    %c0_i32_0 = arith.constant 0 : i32
    %c0_i32_1 = arith.constant 0 : i32
    return %c0_i32, %c0_i32_0 : i32, i32
  }
  func.func @transform_4(%arg0: i32) -> (i32, i32) {
    %c0_i32 = arith.constant 0 : i32
    %c0_i32_0 = arith.constant 0 : i32
    %c0_i32_1 = arith.constant 0 : i32
    return %c0_i32, %c0_i32_0 : i32, i32
  }
  func.func @transform_5(%arg0: i32) -> (i32, i32) {
    %c0_i32 = arith.constant 0 : i32
    %c0_i32_0 = arith.constant 0 : i32
    %c0_i32_1 = arith.constant 0 : i32
    return %c0_i32, %c0_i32_0 : i32, i32
  }
  func.func @transform_6(%arg0: i32) -> (i32, i32) {
    %c0_i32 = arith.constant 0 : i32
    %c0_i32_0 = arith.constant 0 : i32
    %c0_i32_1 = arith.constant 0 : i32
    return %c0_i32, %c0_i32_0 : i32, i32
  }
  func.func @transform_7(%arg0: i32) -> (i32, i32) {
    %c0_i32 = arith.constant 0 : i32
    %c0_i32_0 = arith.constant 0 : i32
    %c0_i32_1 = arith.constant 0 : i32
    return %c0_i32, %c0_i32_0 : i32, i32
  }
  func.func @transform_8(%arg0: i32) -> (i32, i32) {
    %c0_i32 = arith.constant 0 : i32
    %c0_i32_0 = arith.constant 0 : i32
    %c0_i32_1 = arith.constant 0 : i32
    return %c0_i32, %c0_i32_0 : i32, i32
  }
  func.func @transform_9(%arg0: i32) -> (i32, i32) {
    %c0_i32 = arith.constant 0 : i32
    %c0_i32_0 = arith.constant 0 : i32
    %c0_i32_1 = arith.constant 0 : i32
    return %c0_i32, %c0_i32_0 : i32, i32
  }
  func.func @transform_10(%arg0: i32) -> (i32, i32) {
    %c0_i32 = arith.constant 0 : i32
    %c0_i32_0 = arith.constant 0 : i32
    return %arg0, %c0_i32 : i32, i32
  }
}

</mosaic_0001>

<llo_original>
// kernel: marking_head_forward.1
$region0: #{marking_head_forward.1}
  #allocation0 [shape = 'u32[]', space=smem, size = 0x4, offset = 0x4, fixed_abs, tag = 'smem constant byte address 0x4 - core index']
  #allocation1 [shape = 'u32[72,128]{1,0:T(1,128)}', space=vmem, size = 0x9000, scoped, tag = 'internal scratch']
  %s0 = inlined_call_operand.vmem [shape: bf16[40,128], index: 0, kind: input, shape index: {}]
  %s1 = inlined_call_operand.vmem [shape: bf16[40,128], index: 1, kind: input, shape index: {}]
  %s2 = inlined_call_operand.vmem [shape: bf16[128,128], index: 2, kind: input, shape index: {}]
  %s3 = inlined_call_operand.vmem [shape: f32[1,128], index: 3, kind: input, shape index: {}]
  %s4 = inlined_call_operand.vmem [shape: bf16[128,128], index: 4, kind: input, shape index: {}]
  %s5 = inlined_call_operand.vmem [shape: f32[1,128], index: 5, kind: input, shape index: {}]
  %s6 = inlined_call_operand.vmem [shape: bf16[128,128], index: 6, kind: input, shape index: {}]
  %s7 = inlined_call_operand.vmem [shape: f32[1,128], index: 7, kind: input, shape index: {}]
  %s8 = inlined_call_operand.vmem [shape: bf16[128,8], index: 8, kind: input, shape index: {}]
  %s9 = inlined_call_operand.vmem [shape: f32[1,8], index: 9, kind: input, shape index: {}]
  %s10 = inlined_call_operand.vmem [shape: f32[40,8], index: 10, kind: output, shape index: {}]
  %s11 = sld [smem:[#allocation0]]
  $region121: #{marking_head_forward.1} parent=0
    _
  %s13 = ssub.s32 1, %s11
  %s14 = scalar_select 0, %s13, %s11
  $region1: #{marking_head_forward.1} parent=0
    #allocation2 [shape = 'u8[16384]{0}', space=vmem, size = 0x4000, scoped, tag = 'output window, operand 0']
    loop: start=0, step=1, limit=5
    $region2: #{marking_head_forward.1} parent=1 // loop_pre_header
      _
    $region3: #{marking_head_forward.1} parent=1 // loop_header
      %s16 = sphi 0, %s20
      %p17 = scmp.ge.s32.totalorder %s16, 5
      %s26 = sphi 0, %s28
      %s29 = sphi 0, %s26
      %s30 = sphi 0, %s29
      %s46 = sphi 0, %s30
      %s52 = sphi 0, %s54
      %s55 = sphi 0, %s52
      %s56 = sphi 0, %s55
      %s72 = sphi 0, %s56
      %s76 = sphi 0, %s76
      %s78 = sphi 0, %s76
      %s79 = sphi 0, %s78
      %s93 = sphi 0, %s79
      %s97 = sphi 0, %s97
      %s99 = sphi 0, %s97
      %s100 = sphi 0, %s99
      %s114 = sphi 0, %s100
      %s118 = sphi 0, %s118
      %s120 = sphi 0, %s118
      %s121 = sphi 0, %s120
      %s135 = sphi 0, %s121
      %s139 = sphi 0, %s139
      %s141 = sphi 0, %s139
      %s142 = sphi 0, %s141
      %s156 = sphi 0, %s142
      %s160 = sphi 0, %s160
      %s162 = sphi 0, %s160
      %s163 = sphi 0, %s162
      %s177 = sphi 0, %s163
      %s181 = sphi 0, %s181
      %s183 = sphi 0, %s181
      %s184 = sphi 0, %s183
      %s198 = sphi 0, %s184
      %s202 = sphi 0, %s202
      %s204 = sphi 0, %s202
      %s205 = sphi 0, %s204
      %s219 = sphi 0, %s205
      %s223 = sphi 0, %s223
      %s225 = sphi 0, %s223
      %s226 = sphi 0, %s225
      %s240 = sphi 0, %s226
      %s246 = sphi 0, %s248
      %s249 = sphi 0, %s246
      %s250 = sphi 0, %s249
      %s266 = sphi 0, %s250
    $region4: #{marking_head_forward.1} parent=1 // loop_header_branch
      %19 = sbr.rel (%p17) target = $region8
    $region5: #{marking_head_forward.1} parent=1 // loop_body
      %s21 = ssub.s32 %s16, 1
      %s22 = ssub.s32 %s16, 2
      %s23 = sadd.s32 %s16, 1
      %s24 = ssub.s32 %s16, %s23
      %p25 = scmp.eq.s32.totalorder %s24, 0
      %s27 = sadd.s32 %s26, 1
      %s28 = scalar_select %p25, %s26, %s27
      %p31 = pneg %p25
      %p32 = scmp.eq.s32.totalorder %s16, 2
      %p33 = por %p31, %p32
      %p34 = scmp.ne.s32.totalorder %s26, %s29
      %p35 = scmp.eq.s32.totalorder %s16, 0
      %p36 = por %p34, %p35
      %p37 = scmp.ne.s32.totalorder %s26, %s29
      %p38 = scmp.eq.s32.totalorder %s21, 2
      %p39 = por %p37, %p38
      %p40 = scmp.ne.s32.totalorder %s29, %s30
      %p41 = scmp.eq.s32.totalorder %s21, 0
      %p42 = por %p40, %p41
      %p43 = scmp.ne.s32.totalorder %s29, %s30
      %p44 = scmp.eq.s32.totalorder %s22, 2
      %p45 = por %p43, %p44
      %p47 = scmp.ne.s32.totalorder %s30, %s46
      %p48 = scmp.eq.s32.totalorder %s22, 0
      %p49 = por %p47, %p48
      %s50 = ssub.s32 %s16, %s23
      %p51 = scmp.eq.s32.totalorder %s50, 0
      %s53 = sadd.s32 %s52, 1
      %s54 = scalar_select %p51, %s52, %s53
      %p57 = pneg %p51
      %p58 = scmp.eq.s32.totalorder %s16, 2
      %p59 = por %p57, %p58
      %p60 = scmp.ne.s32.totalorder %s52, %s55
      %p61 = scmp.eq.s32.totalorder %s16, 0
      %p62 = por %p60, %p61
      %p63 = scmp.ne.s32.totalorder %s52, %s55
      %p64 = scmp.eq.s32.totalorder %s21, 2
      %p65 = por %p63, %p64
      %p66 = scmp.ne.s32.totalorder %s55, %s56
      %p67 = scmp.eq.s32.totalorder %s21, 0
      %p68 = por %p66, %p67
      %p69 = scmp.ne.s32.totalorder %s55, %s56
      %p70 = scmp.eq.s32.totalorder %s22, 2
      %p71 = por %p69, %p70
      %p73 = scmp.ne.s32.totalorder %s56, %s72
      %p74 = scmp.eq.s32.totalorder %s22, 0
      %p75 = por %p73, %p74
      %s77 = sadd.s32 %s76, 1
      %p80 = scmp.eq.s32.totalorder %s16, 2
      %p81 = scmp.ne.s32.totalorder %s76, %s78
      %p82 = scmp.eq.s32.totalorder %s16, 0
      %p83 = por %p81, %p82
      %p84 = scmp.ne.s32.totalorder %s76, %s78
      %p85 = scmp.eq.s32.totalorder %s21, 2
      %p86 = por %p84, %p85
      %p87 = scmp.ne.s32.totalorder %s78, %s79
      %p88 = scmp.eq.s32.totalorder %s21, 0
      %p89 = por %p87, %p88
      %p90 = scmp.ne.s32.totalorder %s78, %s79
      %p91 = scmp.eq.s32.totalorder %s22, 2
      %p92 = por %p90, %p91
      %p94 = scmp.ne.s32.totalorder %s79, %s93
      %p95 = scmp.eq.s32.totalorder %s22, 0
      %p96 = por %p94, %p95
      %s98 = sadd.s32 %s97, 1
      %p101 = scmp.eq.s32.totalorder %s16, 2
      %p102 = scmp.ne.s32.totalorder %s97, %s99
      %p103 = scmp.eq.s32.totalorder %s16, 0
      %p104 = por %p102, %p103
      %p105 = scmp.ne.s32.totalorder %s97, %s99
      %p106 = scmp.eq.s32.totalorder %s21, 2
      %p107 = por %p105, %p106
      %p108 = scmp.ne.s32.totalorder %s99, %s100
      %p109 = scmp.eq.s32.totalorder %s21, 0
      %p110 = por %p108, %p109
      %p111 = scmp.ne.s32.totalorder %s99, %s100
      %p112 = scmp.eq.s32.totalorder %s22, 2
      %p113 = por %p111, %p112
      %p115 = scmp.ne.s32.totalorder %s100, %s114
      %p116 = scmp.eq.s32.totalorder %s22, 0
      %p117 = por %p115, %p116
      %s119 = sadd.s32 %s118, 1
      %p122 = scmp.eq.s32.totalorder %s16, 2
      %p123 = scmp.ne.s32.totalorder %s118, %s120
      %p124 = scmp.eq.s32.totalorder %s16, 0
      %p125 = por %p123, %p124
      %p126 = scmp.ne.s32.totalorder %s118, %s120
      %p127 = scmp.eq.s32.totalorder %s21, 2
      %p128 = por %p126, %p127
      %p129 = scmp.ne.s32.totalorder %s120, %s121
      %p130 = scmp.eq.s32.totalorder %s21, 0
      %p131 = por %p129, %p130
      %p132 = scmp.ne.s32.totalorder %s120, %s121
      %p133 = scmp.eq.s32.totalorder %s22, 2
      %p134 = por %p132, %p133
      %p136 = scmp.ne.s32.totalorder %s121, %s135
      %p137 = scmp.eq.s32.totalorder %s22, 0
      %p138 = por %p136, %p137
      %s140 = sadd.s32 %s139, 1
      %p143 = scmp.eq.s32.totalorder %s16, 2
      %p144 = scmp.ne.s32.totalorder %s139, %s141
      %p145 = scmp.eq.s32.totalorder %s16, 0
      %p146 = por %p144, %p145
      %p147 = scmp.ne.s32.totalorder %s139, %s141
      %p148 = scmp.eq.s32.totalorder %s21, 2
      %p149 = por %p147, %p148
      %p150 = scmp.ne.s32.totalorder %s141, %s142
      %p151 = scmp.eq.s32.totalorder %s21, 0
      %p152 = por %p150, %p151
      %p153 = scmp.ne.s32.totalorder %s141, %s142
      %p154 = scmp.eq.s32.totalorder %s22, 2
      %p155 = por %p153, %p154
      %p157 = scmp.ne.s32.totalorder %s142, %s156
      %p158 = scmp.eq.s32.totalorder %s22, 0
      %p159 = por %p157, %p158
      %s161 = sadd.s32 %s160, 1
      %p164 = scmp.eq.s32.totalorder %s16, 2
      %p165 = scmp.ne.s32.totalorder %s160, %s162
      %p166 = scmp.eq.s32.totalorder %s16, 0
      %p167 = por %p165, %p166
      %p168 = scmp.ne.s32.totalorder %s160, %s162
      %p169 = scmp.eq.s32.totalorder %s21, 2
      %p170 = por %p168, %p169
      %p171 = scmp.ne.s32.totalorder %s162, %s163
      %p172 = scmp.eq.s32.totalorder %s21, 0
      %p173 = por %p171, %p172
      %p174 = scmp.ne.s32.totalorder %s162, %s163
      %p175 = scmp.eq.s32.totalorder %s22, 2
      %p176 = por %p174, %p175
      %p178 = scmp.ne.s32.totalorder %s163, %s177
      %p179 = scmp.eq.s32.totalorder %s22, 0
      %p180 = por %p178, %p179
      %s182 = sadd.s32 %s181, 1
      %p185 = scmp.eq.s32.totalorder %s16, 2
      %p186 = scmp.ne.s32.totalorder %s181, %s183
      %p187 = scmp.eq.s32.totalorder %s16, 0
      %p188 = por %p186, %p187
      %p189 = scmp.ne.s32.totalorder %s181, %s183
      %p190 = scmp.eq.s32.totalorder %s21, 2
      %p191 = por %p189, %p190
      %p192 = scmp.ne.s32.totalorder %s183, %s184
      %p193 = scmp.eq.s32.totalorder %s21, 0
      %p194 = por %p192, %p193
      %p195 = scmp.ne.s32.totalorder %s183, %s184
      %p196 = scmp.eq.s32.totalorder %s22, 2
      %p197 = por %p195, %p196
      %p199 = scmp.ne.s32.totalorder %s184, %s198
      %p200 = scmp.eq.s32.totalorder %s22, 0
      %p201 = por %p199, %p200
      %s203 = sadd.s32 %s202, 1
      %p206 = scmp.eq.s32.totalorder %s16, 2
      %p207 = scmp.ne.s32.totalorder %s202, %s204
      %p208 = scmp.eq.s32.totalorder %s16, 0
      %p209 = por %p207, %p208
      %p210 = scmp.ne.s32.totalorder %s202, %s204
      %p211 = scmp.eq.s32.totalorder %s21, 2
      %p212 = por %p210, %p211
      %p213 = scmp.ne.s32.totalorder %s204, %s205
      %p214 = scmp.eq.s32.totalorder %s21, 0
      %p215 = por %p213, %p214
      %p216 = scmp.ne.s32.totalorder %s204, %s205
      %p217 = scmp.eq.s32.totalorder %s22, 2
      %p218 = por %p216, %p217
      %p220 = scmp.ne.s32.totalorder %s205, %s219
      %p221 = scmp.eq.s32.totalorder %s22, 0
      %p222 = por %p220, %p221
      %s224 = sadd.s32 %s223, 1
      %p227 = scmp.eq.s32.totalorder %s16, 2
      %p228 = scmp.ne.s32.totalorder %s223, %s225
      %p229 = scmp.eq.s32.totalorder %s16, 0
      %p230 = por %p228, %p229
      %p231 = scmp.ne.s32.totalorder %s223, %s225
      %p232 = scmp.eq.s32.totalorder %s21, 2
      %p233 = por %p231, %p232
      %p234 = scmp.ne.s32.totalorder %s225, %s226
      %p235 = scmp.eq.s32.totalorder %s21, 0
      %p236 = por %p234, %p235
      %p237 = scmp.ne.s32.totalorder %s225, %s226
      %p238 = scmp.eq.s32.totalorder %s22, 2
      %p239 = por %p237, %p238
      %p241 = scmp.ne.s32.totalorder %s226, %s240
      %p242 = scmp.eq.s32.totalorder %s22, 0
      %p243 = por %p241, %p242
      %s244 = ssub.s32 %s16, %s23
      %p245 = scmp.eq.s32.totalorder %s244, 0
      %s247 = sadd.s32 %s246, 1
      %s248 = scalar_select %p245, %s246, %s247
      %p251 = pneg %p245
      %p252 = scmp.eq.s32.totalorder %s16, 2
      %p253 = por %p251, %p252
      %p254 = scmp.ne.s32.totalorder %s246, %s249
      %p255 = scmp.eq.s32.totalorder %s16, 0
      %p256 = por %p254, %p255
      %p257 = scmp.ne.s32.totalorder %s246, %s249
      %p258 = scmp.eq.s32.totalorder %s21, 2
      %p259 = por %p257, %p258
      %p260 = scmp.ne.s32.totalorder %s249, %s250
      %p261 = scmp.eq.s32.totalorder %s21, 0
      %p262 = por %p260, %p261
      %p263 = scmp.ne.s32.totalorder %s249, %s250
      %p264 = scmp.eq.s32.totalorder %s22, 2
      %p265 = por %p263, %p264
      %p267 = scmp.ne.s32.totalorder %s250, %s266
      %p268 = scmp.eq.s32.totalorder %s22, 0
      %p269 = por %p267, %p268
      %p270 = scmp.le.s32.totalorder 1, %s16
      %p271 = scmp.lt.s32.totalorder %s16, 4
      %p272 = pnand %p270, %p271
      %p273 = pneg %p272
      // Predicated region
      $region9: #{marking_head_forward.1} parent=5 // pred_check
        _
      $region10: #{marking_head_forward.1} parent=5 // pred_check_branch
        %275 = sbr.rel (%p272) target = $region12
      $region11: #{marking_head_forward.1} parent=5 // pred_region
        %s276 = ssub.s32 %s16, 1
        // Predicated region
        $region13: #{marking_head_forward.1} parent=11 // pred_check
          %p277 = pneg %p89
        $region14: #{marking_head_forward.1} parent=11 // pred_check_branch
          %279 = sbr.rel (%p277) target = $region16
        $region15: #{marking_head_forward.1} parent=11 // pred_region
          _
        $region16: #{marking_head_forward.1} parent=11 // pred_fallthru
          _
        // Predicated region
        $region17: #{marking_head_forward.1} parent=11 // pred_check
          %p280 = pneg %p110
        $region18: #{marking_head_forward.1} parent=11 // pred_check_branch
          %282 = sbr.rel (%p280) target = $region20
        $region19: #{marking_head_forward.1} parent=11 // pred_region
          _
        $region20: #{marking_head_forward.1} parent=11 // pred_fallthru
          _
        // Predicated region
        $region21: #{marking_head_forward.1} parent=11 // pred_check
          %p283 = pneg %p131
        $region22: #{marking_head_forward.1} parent=11 // pred_check_branch
          %285 = sbr.rel (%p283) target = $region24
        $region23: #{marking_head_forward.1} parent=11 // pred_region
          _
        $region24: #{marking_head_forward.1} parent=11 // pred_fallthru
          _
        // Predicated region
        $region25: #{marking_head_forward.1} parent=11 // pred_check
          %p286 = pneg %p152
        $region26: #{marking_head_forward.1} parent=11 // pred_check_branch
          %288 = sbr.rel (%p286) target = $region28
        $region27: #{marking_head_forward.1} parent=11 // pred_region
          _
        $region28: #{marking_head_forward.1} parent=11 // pred_fallthru
          _
        // Predicated region
        $region29: #{marking_head_forward.1} parent=11 // pred_check
          %p289 = pneg %p173
        $region30: #{marking_head_forward.1} parent=11 // pred_check_branch
          %291 = sbr.rel (%p289) target = $region32
        $region31: #{marking_head_forward.1} parent=11 // pred_region
          _
        $region32: #{marking_head_forward.1} parent=11 // pred_fallthru
          _
        // Predicated region
        $region33: #{marking_head_forward.1} parent=11 // pred_check
          %p292 = pneg %p194
        $region34: #{marking_head_forward.1} parent=11 // pred_check_branch
          %294 = sbr.rel (%p292) target = $region36
        $region35: #{marking_head_forward.1} parent=11 // pred_region
          _
        $region36: #{marking_head_forward.1} parent=11 // pred_fallthru
          _
        // Predicated region
        $region37: #{marking_head_forward.1} parent=11 // pred_check
          %p295 = pneg %p215
        $region38: #{marking_head_forward.1} parent=11 // pred_check_branch
          %297 = sbr.rel (%p295) target = $region40
        $region39: #{marking_head_forward.1} parent=11 // pred_region
          _
        $region40: #{marking_head_forward.1} parent=11 // pred_fallthru
          _
        // Predicated region
        $region41: #{marking_head_forward.1} parent=11 // pred_check
          %p298 = pneg %p236
        $region42: #{marking_head_forward.1} parent=11 // pred_check_branch
          %300 = sbr.rel (%p298) target = $region44
        $region43: #{marking_head_forward.1} parent=11 // pred_region
          _
        $region44: #{marking_head_forward.1} parent=11 // pred_fallthru
          _
      $region12: #{marking_head_forward.1} parent=5 // pred_fallthru
        _
      %p301 = scmp.lt.s32.totalorder %s16, 3
      // Predicated region
      $region45: #{marking_head_forward.1} parent=5 // pred_check
        %p302 = pneg %p301
      $region46: #{marking_head_forward.1} parent=5 // pred_check_branch
        %304 = sbr.rel (%p302) target = $region48
      $region47: #{marking_head_forward.1} parent=5 // pred_region
        // Predicated region
        $region49: #{marking_head_forward.1} parent=47 // pred_check
          %p305 = pneg %p36
        $region50: #{marking_head_forward.1} parent=47 // pred_check_branch
          %307 = sbr.rel (%p305) target = $region52
        $region51: #{marking_head_forward.1} parent=47 // pred_region
          %s308 = smul.u32 2, %s16
          %s309 = ssub.s32 5, %s308
          %p310 = scmp.lt.s32.totalorder %s309, 2
          %s311 = scalar_select %p310, %s309, 2
          %s312 = smul.u32 4, %s311
          %p313 = scmp.lt.s32.totalorder %s308, 4
          %s314 = scalar_select %p313, %s308, 4
          %s315 = smul.addr %s314, 4
          %s316 = scalar_lea.vmem %s0, %s315
          %s317 = smul.u32 2, %s16
          %s318 = ssub.s32 5, %s317
          %p319 = scmp.lt.s32.totalorder %s318, 2
          %s320 = scalar_select %p319, %s318, 2
          %s321 = smul.u32 4, %s320
        $region52: #{marking_head_forward.1} parent=47 // pred_fallthru
          _
        // Predicated region
        $region53: #{marking_head_forward.1} parent=47 // pred_check
          %p322 = pneg %p62
        $region54: #{marking_head_forward.1} parent=47 // pred_check_branch
          %324 = sbr.rel (%p322) target = $region56
        $region55: #{marking_head_forward.1} parent=47 // pred_region
          %s325 = smul.u32 2, %s16
          %s326 = ssub.s32 5, %s325
          %p327 = scmp.lt.s32.totalorder %s326, 2
          %s328 = scalar_select %p327, %s326, 2
          %s329 = smul.u32 4, %s328
          %p330 = scmp.lt.s32.totalorder %s325, 4
          %s331 = scalar_select %p330, %s325, 4
          %s332 = smul.addr %s331, 4
          %s333 = scalar_lea.vmem %s1, %s332
          %s334 = smul.u32 2, %s16
          %s335 = ssub.s32 5, %s334
          %p336 = scmp.lt.s32.totalorder %s335, 2
          %s337 = scalar_select %p336, %s335, 2
          %s338 = smul.u32 4, %s337
        $region56: #{marking_head_forward.1} parent=47 // pred_fallthru
          _
      $region48: #{marking_head_forward.1} parent=5 // pred_fallthru
        _
      %p339 = scmp.le.s32.totalorder 1, %s16
      %p340 = scmp.lt.s32.totalorder %s16, 4
      %p341 = pnand %p339, %p340
      %p342 = pneg %p341
      // Predicated region
      $region57: #{marking_head_forward.1} parent=5 // pred_check
        _
      $region58: #{marking_head_forward.1} parent=5 // pred_check_branch
        %344 = sbr.rel (%p341) target = $region60
      $region59: #{marking_head_forward.1} parent=5 // pred_region
        %s345 = ssub.s32 %s16, 1
        %s346 = smul.u32 2, %s21
        %s347 = ssub.s32 5, %s346
        %p348 = scmp.lt.s32.totalorder %s347, 2
        %s349 = scalar_select %p348, %s347, 2
        %s350 = smul.u32 4, %s349
        %p351 = scmp.lt.s32.totalorder %s346, 4
        %s352 = scalar_select %p351, %s346, 4
        %s353 = smul.addr %s352, 4
        %s354 = scalar_lea.vmem %s0, %s353
        %p355 = pneg %p42
        %p356 = pneg %p39
        %s357 = smul.u32 2, %s21
        %s358 = ssub.s32 5, %s357
        %p359 = scmp.lt.s32.totalorder %s358, 2
        %s360 = scalar_select %p359, %s358, 2
        %s361 = smul.u32 4, %s360
        %p362 = scmp.lt.s32.totalorder %s357, 4
        %s363 = scalar_select %p362, %s357, 4
        %s364 = smul.addr %s363, 4
        %s365 = scalar_lea.vmem %s1, %s364
        %p366 = pneg %p68
        %p367 = pneg %p65
        %p368 = pneg %p89
        %p369 = pneg %p86
        %p370 = pneg %p110
        %p371 = pneg %p107
        %p372 = pneg %p131
        %p373 = pneg %p128
        %p374 = pneg %p152
        %p375 = pneg %p149
        %p376 = pneg %p173
        %p377 = pneg %p170
        %p378 = pneg %p194
        %p379 = pneg %p191
        %p380 = pneg %p215
        %p381 = pneg %p212
        %p382 = pneg %p236
        %p383 = pneg %p233
        %p384 = pneg %p262
        %p385 = pneg %p259
        %s386 = sand.u32 %s249, 1
        %s387 = sand.u32 %s249, 1
        %s388 = smul.addr %s387, 16
        %s389 = scalar_lea.vmem [#allocation2], %s388
        %s390 = smul.u32 2, %s21
        %s391 = ssub.s32 5, %s390
        %p392 = scmp.lt.s32.totalorder %s391, 2
        %s393 = scalar_select %p392, %s391, 2
        %s394 = smul.u32 4, %s393
        %p395 = scmp.lt.s32.totalorder %s390, 4
        %s396 = scalar_select %p395, %s390, 4
        %s397 = smul.addr %s396, 4
        %s398 = scalar_lea.vmem %s0, %s397
        %s399 = smul.u32 2, %s21
        %s400 = ssub.s32 5, %s399
        %p401 = scmp.lt.s32.totalorder %s400, 2
        %s402 = scalar_select %p401, %s400, 2
        %s403 = smul.u32 4, %s402
        %s404 = smul.u32 2, %s21
        %s405 = ssub.s32 5, %s404
        %p406 = scmp.lt.s32.totalorder %s405, 2
        %s407 = scalar_select %p406, %s405, 2
        %s408 = smul.u32 4, %s407
        %p409 = scmp.lt.s32.totalorder %s404, 4
        %s410 = scalar_select %p409, %s404, 4
        %s411 = smul.addr %s410, 4
        %s412 = scalar_lea.vmem %s1, %s411
        %s413 = smul.u32 2, %s21
        %s414 = ssub.s32 5, %s413
        %p415 = scmp.lt.s32.totalorder %s414, 2
        %s416 = scalar_select %p415, %s414, 2
        %s417 = smul.u32 4, %s416
        %s418 = smul.u32 2, %s21
        %s419 = ssub.s32 5, %s418
        %p420 = scmp.lt.s32.totalorder %s419, 2
        %s421 = scalar_select %p420, %s419, 2
        %s422 = smul.u32 8, %s421
        %v423 = vld [vmem:[%s398] sm:$0xf]
        %v424 = vld [vmem:[%s398 + $0x4] sm:$0xf]
        %v425 = vld [vmem:[%s2] sm:$0xf]
        %v426 = vld [vmem:[%s2 + $0x4] sm:$0xf]
        %v427 = vld [vmem:[%s2 + $0x8] sm:$0xf]
        %v428 = vld [vmem:[%s2 + $0xc] sm:$0xf]
        %v429 = vld [vmem:[%s2 + $0x10] sm:$0xf]
        %v430 = vld [vmem:[%s2 + $0x14] sm:$0xf]
        %v431 = vld [vmem:[%s2 + $0x18] sm:$0xf]
        %v432 = vld [vmem:[%s2 + $0x1c] sm:$0xf]
        %v433 = vld [vmem:[%s2 + $0x20] sm:$0xf]
        %v434 = vld [vmem:[%s2 + $0x24] sm:$0xf]
        %v435 = vld [vmem:[%s2 + $0x28] sm:$0xf]
        %v436 = vld [vmem:[%s2 + $0x2c] sm:$0xf]
        %v437 = vld [vmem:[%s2 + $0x30] sm:$0xf]
        %v438 = vld [vmem:[%s2 + $0x34] sm:$0xf]
        %v439 = vld [vmem:[%s2 + $0x38] sm:$0xf]
        %v440 = vld [vmem:[%s2 + $0x3c] sm:$0xf]
        %v441 = vld [vmem:[%s412] sm:$0xf]
        %v442 = vld [vmem:[%s412 + $0x4] sm:$0xf]
        %v443 = vld [vmem:[%s4] sm:$0xf]
        %v444 = vld [vmem:[%s4 + $0x4] sm:$0xf]
        %v445 = vld [vmem:[%s4 + $0x8] sm:$0xf]
        %v446 = vld [vmem:[%s4 + $0xc] sm:$0xf]
        %v447 = vld [vmem:[%s4 + $0x10] sm:$0xf]
        %v448 = vld [vmem:[%s4 + $0x14] sm:$0xf]
        %v449 = vld [vmem:[%s4 + $0x18] sm:$0xf]
        %v450 = vld [vmem:[%s4 + $0x1c] sm:$0xf]
        %v451 = vld [vmem:[%s4 + $0x20] sm:$0xf]
        %v452 = vld [vmem:[%s4 + $0x24] sm:$0xf]
        %v453 = vld [vmem:[%s4 + $0x28] sm:$0xf]
        %v454 = vld [vmem:[%s4 + $0x2c] sm:$0xf]
        %v455 = vld [vmem:[%s4 + $0x30] sm:$0xf]
        %v456 = vld [vmem:[%s4 + $0x34] sm:$0xf]
        %v457 = vld [vmem:[%s4 + $0x38] sm:$0xf]
        %v458 = vld [vmem:[%s4 + $0x3c] sm:$0xf]
        %v459 = vld [vmem:[%s3] sm:$0x1]
        %v461 = vperm.slane %v459, 0
        %v465 = vunpack.c.l.b16 %v423
        %v466 = vunpack.c.l.b16 %v424
        %v467 = vpack.c.b16 %v466, %v465
        %v485 = vunpack.c.l.b16 %v425
        %v486 = vunpack.c.l.b16 %v426
        %v487 = vunpack.c.l.b16 %v427
        %v488 = vunpack.c.l.b16 %v428
        %v489 = vunpack.c.l.b16 %v429
        %v490 = vunpack.c.l.b16 %v430
        %v491 = vunpack.c.l.b16 %v431
        %v492 = vunpack.c.l.b16 %v432
        %v493 = vunpack.c.l.b16 %v433
        %v494 = vunpack.c.l.b16 %v434
        %v495 = vunpack.c.l.b16 %v435
        %v496 = vunpack.c.l.b16 %v436
        %v497 = vunpack.c.l.b16 %v437
        %v498 = vunpack.c.l.b16 %v438
        %v499 = vunpack.c.l.b16 %v439
        %v500 = vunpack.c.l.b16 %v440
        %v501 = vpack.c.b16 %v486, %v485
        %v502 = vpack.c.b16 %v488, %v487
        %v503 = vpack.c.b16 %v490, %v489
        %v504 = vpack.c.b16 %v492, %v491
        %v505 = vpack.c.b16 %v494, %v493
        %v506 = vpack.c.b16 %v496, %v495
        %v507 = vpack.c.b16 %v498, %v497
        %v508 = vpack.c.b16 %v500, %v499
        %517 = vmatpush.bf16.msra.mxu0 %v508
        %518 = vmatpush.bf16.msra.mxu0 %v507
        %519 = vmatpush.bf16.msra.mxu0 %v506
        %520 = vmatpush.bf16.msra.mxu0 %v505
        %521 = vmatpush.bf16.msra.mxu0 %v504
        %522 = vmatpush.bf16.msra.mxu0 %v503
        %523 = vmatpush.bf16.msra.mxu0 %v502
        %524 = vmatpush.bf16.msra.mxu0 %v501
        %525 = vmatmul.bf16.gmra.mxu0 %v467
        %v526 = vpop.f32.mrf.mxu0
        %v527 = vadd.f32 %v461, %v526
        %v528 = vpop.f32.mrf.mxu0
        %v529 = vadd.f32 %v461, %v528
        %530 = vdwg.mxu0
        %v531 = vmax.f32 %v527, 0.0
        %v532 = vmax.f32 %v529, 0.0
        %v533 = vld [vmem:[%s5] sm:$0x1]
        %v535 = vperm.slane %v533, 0
        %v539 = vunpack.c.l.b16 %v441
        %v540 = vunpack.c.l.b16 %v442
        %v541 = vpack.c.b16 %v540, %v539
        %v559 = vunpack.c.l.b16 %v443
        %v560 = vunpack.c.l.b16 %v444
        %v561 = vunpack.c.l.b16 %v445
        %v562 = vunpack.c.l.b16 %v446
        %v563 = vunpack.c.l.b16 %v447
        %v564 = vunpack.c.l.b16 %v448
        %v565 = vunpack.c.l.b16 %v449
        %v566 = vunpack.c.l.b16 %v450
        %v567 = vunpack.c.l.b16 %v451
        %v568 = vunpack.c.l.b16 %v452
        %v569 = vunpack.c.l.b16 %v453
        %v570 = vunpack.c.l.b16 %v454
        %v571 = vunpack.c.l.b16 %v455
        %v572 = vunpack.c.l.b16 %v456
        %v573 = vunpack.c.l.b16 %v457
        %v574 = vunpack.c.l.b16 %v458
        %v575 = vpack.c.b16 %v560, %v559
        %v576 = vpack.c.b16 %v562, %v561
        %v577 = vpack.c.b16 %v564, %v563
        %v578 = vpack.c.b16 %v566, %v565
        %v579 = vpack.c.b16 %v568, %v567
        %v580 = vpack.c.b16 %v570, %v569
        %v581 = vpack.c.b16 %v572, %v571
        %v582 = vpack.c.b16 %v574, %v573
        %591 = vmatpush.bf16.msra.mxu0 %v582
        %592 = vmatpush.bf16.msra.mxu0 %v581
        %593 = vmatpush.bf16.msra.mxu0 %v580
        %594 = vmatpush.bf16.msra.mxu0 %v579
        %595 = vmatpush.bf16.msra.mxu0 %v578
        %596 = vmatpush.bf16.msra.mxu0 %v577
        %597 = vmatpush.bf16.msra.mxu0 %v576
        %598 = vmatpush.bf16.msra.mxu0 %v575
        %599 = vmatmul.bf16.gmra.mxu0 %v541
        %v600 = vpop.f32.mrf.mxu0
        %v601 = vadd.f32 %v535, %v600
        %v602 = vpop.f32.mrf.mxu0
        %v603 = vadd.f32 %v535, %v602
        %604 = vdwg.mxu0
        %v605 = vmax.f32 %v601, 0.0
        %v606 = vmax.f32 %v603, 0.0
        %v607 = vadd.f32 %v531, %v605
        %v608 = vadd.f32 %v532, %v606
        %v609 = vpack.c.bf16 %v608, %v607
        %v610 = vld [vmem:[%s6] sm:$0xf]
        %v611 = vld [vmem:[%s6 + $0x4] sm:$0xf]
        %v612 = vld [vmem:[%s6 + $0x8] sm:$0xf]
        %v613 = vld [vmem:[%s6 + $0xc] sm:$0xf]
        %v614 = vld [vmem:[%s6 + $0x10] sm:$0xf]
        %v615 = vld [vmem:[%s6 + $0x14] sm:$0xf]
        %v616 = vld [vmem:[%s6 + $0x18] sm:$0xf]
        %v617 = vld [vmem:[%s6 + $0x1c] sm:$0xf]
        %v618 = vld [vmem:[%s6 + $0x20] sm:$0xf]
        %v619 = vld [vmem:[%s6 + $0x24] sm:$0xf]
        %v620 = vld [vmem:[%s6 + $0x28] sm:$0xf]
        %v621 = vld [vmem:[%s6 + $0x2c] sm:$0xf]
        %v622 = vld [vmem:[%s6 + $0x30] sm:$0xf]
        %v623 = vld [vmem:[%s6 + $0x34] sm:$0xf]
        %v624 = vld [vmem:[%s6 + $0x38] sm:$0xf]
        %v625 = vld [vmem:[%s6 + $0x3c] sm:$0xf]
        %v626 = vld [vmem:[%s7] sm:$0x1]
        %v628 = vperm.slane %v626, 0
        %v646 = vunpack.c.l.b16 %v610
        %v647 = vunpack.c.l.b16 %v611
        %v648 = vunpack.c.l.b16 %v612
        %v649 = vunpack.c.l.b16 %v613
        %v650 = vunpack.c.l.b16 %v614
        %v651 = vunpack.c.l.b16 %v615
        %v652 = vunpack.c.l.b16 %v616
        %v653 = vunpack.c.l.b16 %v617
        %v654 = vunpack.c.l.b16 %v618
        %v655 = vunpack.c.l.b16 %v619
        %v656 = vunpack.c.l.b16 %v620
        %v657 = vunpack.c.l.b16 %v621
        %v658 = vunpack.c.l.b16 %v622
        %v659 = vunpack.c.l.b16 %v623
        %v660 = vunpack.c.l.b16 %v624
        %v661 = vunpack.c.l.b16 %v625
        %v662 = vpack.c.b16 %v647, %v646
        %v663 = vpack.c.b16 %v649, %v648
        %v664 = vpack.c.b16 %v651, %v650
        %v665 = vpack.c.b16 %v653, %v652
        %v666 = vpack.c.b16 %v655, %v654
        %v667 = vpack.c.b16 %v657, %v656
        %v668 = vpack.c.b16 %v659, %v658
        %v669 = vpack.c.b16 %v661, %v660
        %678 = vmatpush.bf16.msra.mxu0 %v669
        %679 = vmatpush.bf16.msra.mxu0 %v668
        %680 = vmatpush.bf16.msra.mxu0 %v667
        %681 = vmatpush.bf16.msra.mxu0 %v666
        %682 = vmatpush.bf16.msra.mxu0 %v665
        %683 = vmatpush.bf16.msra.mxu0 %v664
        %684 = vmatpush.bf16.msra.mxu0 %v663
        %685 = vmatpush.bf16.msra.mxu0 %v662
        %686 = vmatmul.bf16.gmra.mxu0 %v609
        %v687 = vpop.f32.mrf.mxu0
        %v688 = vadd.f32 %v628, %v687
        %v689 = vpop.f32.mrf.mxu0
        %v690 = vadd.f32 %v628, %v689
        %691 = vdwg.mxu0
        %v692 = vmax.f32 %v688, 0.0
        %v693 = vmax.f32 %v690, 0.0
        %v694 = vpack.c.bf16 %v693, %v692
        %v695 = vld [vmem:[%s8] sm:$0xf]
        %v696 = vld [vmem:[%s8 + $0x4] sm:$0xf]
        %v697 = vld [vmem:[%s8 + $0x8] sm:$0xf]
        %v698 = vld [vmem:[%s8 + $0xc] sm:$0xf]
        %v699 = vld [vmem:[%s8 + $0x10] sm:$0xf]
        %v700 = vld [vmem:[%s8 + $0x14] sm:$0xf]
        %v701 = vld [vmem:[%s8 + $0x18] sm:$0xf]
        %v702 = vld [vmem:[%s8 + $0x1c] sm:$0xf]
        %v703 = vld [vmem:[%s8 + $0x20] sm:$0xf]
        %v704 = vld [vmem:[%s8 + $0x24] sm:$0xf]
        %v705 = vld [vmem:[%s8 + $0x28] sm:$0xf]
        %v706 = vld [vmem:[%s8 + $0x2c] sm:$0xf]
        %v707 = vld [vmem:[%s8 + $0x30] sm:$0xf]
        %v708 = vld [vmem:[%s8 + $0x34] sm:$0xf]
        %v709 = vld [vmem:[%s8 + $0x38] sm:$0xf]
        %v710 = vld [vmem:[%s8 + $0x3c] sm:$0xf]
        %v711 = vld [vmem:[%s9] sm:$0x1]
        %v713 = vperm.slane %v711, 0
        %v731 = vunpack.c.l.b16 %v695
        %v732 = vunpack.c.l.b16 %v696
        %v733 = vunpack.c.l.b16 %v697
        %v734 = vunpack.c.l.b16 %v698
        %v735 = vunpack.c.l.b16 %v699
        %v736 = vunpack.c.l.b16 %v700
        %v737 = vunpack.c.l.b16 %v701
        %v738 = vunpack.c.l.b16 %v702
        %v739 = vunpack.c.l.b16 %v703
        %v740 = vunpack.c.l.b16 %v704
        %v741 = vunpack.c.l.b16 %v705
        %v742 = vunpack.c.l.b16 %v706
        %v743 = vunpack.c.l.b16 %v707
        %v744 = vunpack.c.l.b16 %v708
        %v745 = vunpack.c.l.b16 %v709
        %v746 = vunpack.c.l.b16 %v710
        %v747 = vpack.c.b16 %v732, %v731
        %v748 = vpack.c.b16 %v734, %v733
        %v749 = vpack.c.b16 %v736, %v735
        %v750 = vpack.c.b16 %v738, %v737
        %v751 = vpack.c.b16 %v740, %v739
        %v752 = vpack.c.b16 %v742, %v741
        %v753 = vpack.c.b16 %v744, %v743
        %v754 = vpack.c.b16 %v746, %v745
        %763 = vmatpush.bf16.msra.mxu0 %v754
        %764 = vmatpush.bf16.msra.mxu0 %v753
        %765 = vmatpush.bf16.msra.mxu0 %v752
        %766 = vmatpush.bf16.msra.mxu0 %v751
        %767 = vmatpush.bf16.msra.mxu0 %v750
        %768 = vmatpush.bf16.msra.mxu0 %v749
        %769 = vmatpush.bf16.msra.mxu0 %v748
        %770 = vmatpush.bf16.msra.mxu0 %v747
        %771 = vmatmul.bf16.gmra.mxu0 %v694
        %v772 = vpop.f32.mrf.mxu0
        %v773 = vadd.f32 %v713, %v772
        %v774 = vpop.f32.mrf.mxu0
        %v775 = vadd.f32 %v713, %v774
        %776 = vdwg.mxu0
        %v777 = vmax.f32 %v773, 0.0
        %v778 = vmax.f32 %v775, 0.0
        %v779 = vand.u32 2147483647, %v773
        %v780 = vand.u32 2147483647, %v775
        %v781 = vsub.f32 0.0, %v779
        %v782 = vsub.f32 0.0, %v780
        %v783 = vmul.f32 %v781, 1.442695
        %v784 = vpow.pop %v783
        %v785 = vmul.f32 %v782, 1.442695
        %v786 = vpow.pop %v785
        %v787 = vadd.f32 %v784, 1.0
        %v788 = vadd.f32 %v786, 1.0
        %v789 = vlog2.pop %v787
        %v790 = vmul.f32 %v789, 0.6931472
        %v791 = vlog2.pop %v788
        %v792 = vmul.f32 %v791, 0.6931472
        %v793 = vadd.f32 %v777, %v790
        %v794 = vadd.f32 %v778, %v792
        %v795 = vlaneseq
        %v796 = vand.u32 %v795, 127
        %v797 = vand.u32 %v796, 1
        %vm798 = vcmp.eq.s32.totalorder %v797, 0
        %v799 = vsub.f32 0.0, %v793
        %v800 = vsub.f32 0.0, %v794
        %v801 = vsub.f32 %v773, %v793
        %v802 = vsub.f32 %v775, %v794
        %v803 = vsel %vm798, %v799, %v801
        %v804 = vsel %vm798, %v800, %v802
        %vm805 = vcmask 64512
        %806 = vst.msk [vmem:[%s389] sm:$0xff] %vm805, %v803
        %807 = vst.msk [vmem:[%s389 + $0x8] sm:$0xff] %vm805, %v804
        %s808 = sand.u32 %s249, 1
        %s809 = sand.u32 %s249, 1
        %s810 = smul.addr %s809, 16
        %s811 = scalar_lea.vmem [#allocation2], %s810
        // Predicated region
        $region61: #{marking_head_forward.1} parent=59 // pred_check
          %p812 = pneg %p259
        $region62: #{marking_head_forward.1} parent=59 // pred_check_branch
          %814 = sbr.rel (%p812) target = $region64
        $region63: #{marking_head_forward.1} parent=59 // pred_region
          %s815 = smul.u32 2, %s21
          %s816 = ssub.s32 5, %s815
          %p817 = scmp.lt.s32.totalorder %s816, 2
          %s818 = scalar_select %p817, %s816, 2
          %s819 = smul.u32 8, %s818
          %p820 = scmp.ne.s32.totalorder 0, %s819
          %s821 = smul.addr %s815, 8
          %s822 = scalar_lea.vmem %s10, %s821
          // Predicated region
          $region65: #{marking_head_forward.1} parent=63 // pred_check
            %p823 = pneg %p820
          $region66: #{marking_head_forward.1} parent=63 // pred_check_branch
            %825 = sbr.rel (%p823) target = $region68
          $region67: #{marking_head_forward.1} parent=63 // pred_region
            // Predicated region
            $region69: #{marking_head_forward.1} parent=67 // pred_check
              _
            $region70: #{marking_head_forward.1} parent=67 // pred_check_branch
              %827 = sbr.rel (0) target = $region72
            $region71: #{marking_head_forward.1} parent=67 // pred_region
              // Predicated region
              $region91: #{marking_head_forward.1} parent=71 // pred_check
                _
              $region92: #{marking_head_forward.1} parent=71 // pred_check_branch
                %879 = sbr.rel (0) target = $region94
              $region93: #{marking_head_forward.1} parent=71 // pred_region
                %s880 = sshrl.u32 %s818, 1
                // While loop
                $region95: #{marking_head_forward.1} parent=93 // loop_pre_header
                  _
                $region96: #{marking_head_forward.1} parent=93 // loop_header
                  %s882 = sphi 0, %s884
                  %p883 = scmp.ge.s32.totalorder %s882, %s880
                  %s887 = sphi 0, %s896
                  %s888 = sphi %s811, %s899
                  %s889 = sphi %s822, %s900
                $region97: #{marking_head_forward.1} parent=93 // loop_header_branch
                  %886 = sbr.rel (%p883) target = $region101
                $region98: #{marking_head_forward.1} parent=93 // loop_body
                  %v890 = vld [vmem:[%s888] sm:$0xff]
                  %891 = vst [vmem:[%s889] sm:$0xff] %v890
                  %v892 = vld [vmem:[%s888 + $0x8] sm:$0xff]
                  %893 = vst [vmem:[%s889 + $0x8] sm:$0xff] %v892
                  %s894 = sadd.s32 1, %s887
                  %p895 = scmp.ge.s32.totalorder %s894, %s880
                  %s896 = scalar_select %p895, 0, %s894
                  %s897 = smul.u32 %s896, 16
                  %s898 = smul.u32 %s896, 16
                  %s899 = scalar_lea.vmem %s811, %s897 [#allocation2]
                  %s900 = scalar_lea.vmem %s822, %s898
                $region99: #{marking_head_forward.1} parent=93 // loop_footer
                  %s884 = sadd.s32 %s882, 1
                $region100: #{marking_head_forward.1} parent=93 // loop_footer_branch
                  %881 = sbr.rel target = $region96
                $region101: #{marking_head_forward.1} parent=93 // loop_exit
                  _
                %s901 = sshrl.u32 %s818, 1
                %s902 = sand.u32 %s818, 1
                %s903 = smul.u32 %s901, 2
                %s904 = smul.u32 8, %s903
                %s905 = scalar_lea.vmem %s811, %s904 [#allocation2]
                %s906 = smul.u32 8, %s903
                %s907 = scalar_lea.vmem %s822, %s906
                // While loop
                $region102: #{marking_head_forward.1} parent=93 // loop_pre_header
                  _
                $region103: #{marking_head_forward.1} parent=93 // loop_header
                  %s909 = sphi 0, %s911
                  %p910 = scmp.ge.s32.totalorder %s909, %s902
                  %s914 = sphi 0, %s921
                  %s915 = sphi %s905, %s924
                  %s916 = sphi %s907, %s925
                $region104: #{marking_head_forward.1} parent=93 // loop_header_branch
                  %913 = sbr.rel (%p910) target = $region108
                $region105: #{marking_head_forward.1} parent=93 // loop_body
                  %v917 = vld [vmem:[%s915] sm:$0xff]
                  %918 = vst [vmem:[%s916] sm:$0xff] %v917
                  %s919 = sadd.s32 1, %s914
                  %p920 = scmp.ge.s32.totalorder %s919, %s902
                  %s921 = scalar_select %p920, 0, %s919
                  %s922 = smul.u32 %s921, 8
                  %s923 = smul.u32 %s921, 8
                  %s924 = scalar_lea.vmem %s905, %s922 [#allocation2]
                  %s925 = scalar_lea.vmem %s907, %s923
                $region106: #{marking_head_forward.1} parent=93 // loop_footer
                  %s911 = sadd.s32 %s909, 1
                $region107: #{marking_head_forward.1} parent=93 // loop_footer_branch
                  %908 = sbr.rel target = $region103
                $region108: #{marking_head_forward.1} parent=93 // loop_exit
                  _
              $region94: #{marking_head_forward.1} parent=71 // pred_fallthru
                _
              // Predicated region
              $region109: #{marking_head_forward.1} parent=71 // pred_check
                _
              $region110: #{marking_head_forward.1} parent=71 // pred_check_branch
                %927 = sbr.rel target = $region112
              $region111: #{marking_head_forward.1} parent=71 // pred_region
                _
              $region112: #{marking_head_forward.1} parent=71 // pred_fallthru
                _
            $region72: #{marking_head_forward.1} parent=67 // pred_fallthru
              _
            // Predicated region
            $region73: #{marking_head_forward.1} parent=67 // pred_check
              _
            $region74: #{marking_head_forward.1} parent=67 // pred_check_branch
              %829 = sbr.rel target = $region76
            $region75: #{marking_head_forward.1} parent=67 // pred_region
              %s831 = ssub.s32 256, 1
              %s832 = sshrl.u32 %s818, 1
              // While loop
              $region77: #{marking_head_forward.1} parent=75 // loop_pre_header
                _
              $region78: #{marking_head_forward.1} parent=75 // loop_header
                %s834 = sphi 0, %s836
                %p835 = scmp.ge.s32.totalorder %s834, %s832
                %s839 = sphi 0, %s848
                %s840 = sphi %s811, %s851
                %s841 = sphi %s822, %s852
              $region79: #{marking_head_forward.1} parent=75 // loop_header_branch
                %838 = sbr.rel (%p835) target = $region83
              $region80: #{marking_head_forward.1} parent=75 // loop_body
                %v842 = vld [vmem:[%s840] sm:%s831]
                %843 = vst [vmem:[%s841] sm:%s831] %v842
                %v844 = vld [vmem:[%s840 + $0x8] sm:%s831]
                %845 = vst [vmem:[%s841 + $0x8] sm:%s831] %v844
                %s846 = sadd.s32 1, %s839
                %p847 = scmp.ge.s32.totalorder %s846, %s832
                %s848 = scalar_select %p847, 0, %s846
                %s849 = smul.u32 %s848, 16
                %s850 = smul.u32 %s848, 16
                %s851 = scalar_lea.vmem %s811, %s849 [#allocation2]
                %s852 = scalar_lea.vmem %s822, %s850
              $region81: #{marking_head_forward.1} parent=75 // loop_footer
                %s836 = sadd.s32 %s834, 1
              $region82: #{marking_head_forward.1} parent=75 // loop_footer_branch
                %833 = sbr.rel target = $region78
              $region83: #{marking_head_forward.1} parent=75 // loop_exit
                _
              %s853 = sshrl.u32 %s818, 1
              %s854 = sand.u32 %s818, 1
              %s855 = smul.u32 %s853, 2
              %s856 = smul.u32 8, %s855
              %s857 = scalar_lea.vmem %s811, %s856 [#allocation2]
              %s858 = smul.u32 8, %s855
              %s859 = scalar_lea.vmem %s822, %s858
              // While loop
              $region84: #{marking_head_forward.1} parent=75 // loop_pre_header
                _
              $region85: #{marking_head_forward.1} parent=75 // loop_header
                %s861 = sphi 0, %s863
                %p862 = scmp.ge.s32.totalorder %s861, %s854
                %s866 = sphi 0, %s873
                %s867 = sphi %s857, %s876
                %s868 = sphi %s859, %s877
              $region86: #{marking_head_forward.1} parent=75 // loop_header_branch
                %865 = sbr.rel (%p862) target = $region90
              $region87: #{marking_head_forward.1} parent=75 // loop_body
                %v869 = vld [vmem:[%s867] sm:%s831]
                %870 = vst [vmem:[%s868] sm:%s831] %v869
                %s871 = sadd.s32 1, %s866
                %p872 = scmp.ge.s32.totalorder %s871, %s854
                %s873 = scalar_select %p872, 0, %s871
                %s874 = smul.u32 %s873, 8
                %s875 = smul.u32 %s873, 8
                %s876 = scalar_lea.vmem %s857, %s874 [#allocation2]
                %s877 = scalar_lea.vmem %s859, %s875
              $region88: #{marking_head_forward.1} parent=75 // loop_footer
                %s863 = sadd.s32 %s861, 1
              $region89: #{marking_head_forward.1} parent=75 // loop_footer_branch
                %860 = sbr.rel target = $region85
              $region90: #{marking_head_forward.1} parent=75 // loop_exit
                _
            $region76: #{marking_head_forward.1} parent=67 // pred_fallthru
              _
          $region68: #{marking_head_forward.1} parent=63 // pred_fallthru
            _
          %928 = vnop
        $region64: #{marking_head_forward.1} parent=59 // pred_fallthru
          _
      $region60: #{marking_head_forward.1} parent=5 // pred_fallthru
        _
      %p929 = scmp.le.s32.totalorder 2, %s16
      // Predicated region
      $region113: #{marking_head_forward.1} parent=5 // pred_check
        %p930 = pneg %p929
      $region114: #{marking_head_forward.1} parent=5 // pred_check_branch
        %932 = sbr.rel (%p930) target = $region116
      $region115: #{marking_head_forward.1} parent=5 // pred_region
        %s933 = ssub.s32 %s16, 2
        // Predicated region
        $region117: #{marking_head_forward.1} parent=115 // pred_check
          %p934 = pneg %p265
        $region118: #{marking_head_forward.1} parent=115 // pred_check_branch
          %936 = sbr.rel (%p934) target = $region120
        $region119: #{marking_head_forward.1} parent=115 // pred_region
          %s937 = sand.u32 %s250, 1
          %s938 = sand.u32 %s250, 1
          %s939 = smul.addr %s938, 16
          %s940 = scalar_lea.vmem [#allocation2], %s939
        $region120: #{marking_head_forward.1} parent=115 // pred_fallthru
          _
      $region116: #{marking_head_forward.1} parent=5 // pred_fallthru
        _
    $region6: #{marking_head_forward.1} parent=1 // loop_footer
      %s20 = sadd.s32 1, %s16
    $region7: #{marking_head_forward.1} parent=1 // loop_footer_branch
      %15 = sbr.rel target = $region3
    $region8: #{marking_head_forward.1} parent=1 // loop_exit
      _

</llo_original>
